<compile_context>
chip_gen: v5e
topology: v5e:2x2
jax: 0.10.0
libtpu: 0.0.40
codegen_flags: <defaults>
</compile_context>

<pallas_src>
import functools

import jax
import jax.numpy as jnp
import numpy as np
from jax.experimental import pallas as pl
from jax.experimental.pallas import tpu as pltpu

LEAKY_SLOPE = 0.01        # nn.LeakyReLU default negative_slope
BN_EPS = 1e-5             # nn.BatchNorm1d default eps
ACT_DTYPE = jnp.bfloat16  # inter-pass activation storage dtype (stats stay f32)


def _round_up(v, m):
    return (v + m - 1) // m * m


# ----------------------------- in-kernel helpers ---------------------------- #

def _conv_taps(x, K, lane_idx):
    """K tap-shifted copies of x for a stride-1 'same' conv.

    x: (NB, C, L) f32.  Returns (NB, K*C, L), tap-major / channel-minor, to
    match the (Cout, K*C) weight layout built in the wrapper.  Shifts use
    pltpu.roll (XLU) plus a boundary mask from the hoisted lane iota, instead
    of concat-with-zeros per tap.
    """
    L = x.shape[-1]
    pad = (K - 1) // 2
    taps = []
    for k in range(K):
        off = k - pad                           # tap k reads x[:, :, l + off]
        if off == 0:
            taps.append(x)
            continue
        rolled = pltpu.roll(x, (-off) % L, 2)   # rolled[l] == x[(l + off) % L]
        if off > 0:
            valid = lane_idx < (L - off)
        else:
            valid = lane_idx >= (-off)
        taps.append(jnp.where(valid, rolled, 0.0))
    return jnp.concatenate(taps, axis=1)


def _batched_conv(taps, w):
    """(NB, KC, L) x (Cout, KC) -> (NB, Cout, L), one batched MXU matmul."""
    nb = taps.shape[0]
    wb = jnp.broadcast_to(w[None], (nb,) + w.shape)
    return jnp.einsum("nok,nkl->nol", wb, taps,
                      preferred_element_type=jnp.float32)


def _sum_cols(h):
    """Per-channel sum and sum-of-squares of (NB, C, L) -> two (C, 1) cols."""
    s = jnp.sum(h, axis=(0, 2), keepdims=True)[0]
    q = jnp.sum(h * h, axis=(0, 2), keepdims=True)[0]
    return s, q


# ------------------------------ Pallas kernels ------------------------------ #

def _conv1_sc_kernel(K, x_ref, w1_ref, b1_ref, wsc_ref, bsc_ref,
                     c1_ref, sc_ref, st_ref):
    """conv1 + shortcut 1x1 conv on a batch tile; packed per-tile BN sums."""
    L = x_ref.shape[-1]
    x = x_ref[...].astype(jnp.float32)                        # cast in-kernel
    lane = jax.lax.broadcasted_iota(jnp.int32, (1, 1, L), 2)  # hoisted once
    taps = _conv_taps(x, K, lane)
    h1 = _batched_conv(taps, w1_ref[...]) + b1_ref[...][None]
    sc = _batched_conv(x, wsc_ref[...]) + bsc_ref[...][None]
    c1_ref[...] = h1.astype(c1_ref.dtype)
    sc_ref[...] = sc.astype(sc_ref.dtype)
    s1, q1 = _sum_cols(h1)
    ss, qs = _sum_cols(sc)
    c = s1.shape[0]
    st_ref[0] = jnp.concatenate(
        [s1, q1, ss, qs, jnp.zeros((c, 4), jnp.float32)], axis=1)


def _bn1_conv2_kernel(K, c1_ref, a1_ref, t1_ref, w2_ref, b2_ref,
                      c2_ref, st_ref):
    """bn1 (batch-stat affine) + LeakyReLU + conv2; packed per-tile bn2 sums."""
    L = c1_ref.shape[-1]
    h = c1_ref[...].astype(jnp.float32) * a1_ref[...][None] + t1_ref[...][None]
    h = jnp.where(h > 0, h, LEAKY_SLOPE * h)                  # LeakyReLU
    lane = jax.lax.broadcasted_iota(jnp.int32, (1, 1, L), 2)
    taps = _conv_taps(h, K, lane)
    h2 = _batched_conv(taps, w2_ref[...]) + b2_ref[...][None]
    c2_ref[...] = h2.astype(c2_ref.dtype)
    s2, q2 = _sum_cols(h2)
    c = s2.shape[0]
    st_ref[0] = jnp.concatenate(
        [s2, q2, jnp.zeros((c, 6), jnp.float32)], axis=1)


def _finalize_kernel(c2_ref, sc_ref, a2_ref, t2_ref, asc_ref, tsc_ref, out_ref):
    """bn2 affine + bn_sc affine on the stored shortcut + add + ReLU."""
    h = c2_ref[...].astype(jnp.float32) * a2_ref[...][None] + t2_ref[...][None]
    s = sc_ref[...].astype(jnp.float32) * asc_ref[...][None] + tsc_ref[...][None]
    out_ref[...] = jnp.maximum(h + s, 0.0).astype(out_ref.dtype)


# --------------------------------- wrapper ----------------------------------- #

def _pick_tiles(N, c_in, c_out, L, K, in_itemsize):
    """Generation-aware batch-tile size and VMEM limit."""
    try:
        vmem_cap = int(pltpu.get_tpu_info().vmem_capacity_bytes)
    except Exception:                           # be safe if the query fails
        vmem_cap = 64 << 20                     # v7x physical (most restrictive)
    # Block budget; the per-sample estimate below already counts double
    # buffering of the in/out blocks plus the in-kernel f32 temporaries.
    budget = min(12 << 20, vmem_cap // 5)
    c_max = max(c_in, c_out)
    act_b = jnp.dtype(ACT_DTYPE).itemsize
    per_sample = L * (
        2 * c_in * in_itemsize                  # x block, double-buffered
        + 2 * 2 * 2 * c_out * act_b             # <=2 act blocks in/out, 2-buffered
        + 4 * (K + 3) * c_max                   # f32 im2col taps + results + temps
    )
    nb = int(max(1, min(N, budget // max(per_sample, 1))))
    if N >= 2:                                  # keep >=2 grid steps (v7x: 2 TCs)
        nb = min(nb, max(1, N // 2))
    while N % nb:
        nb -= 1
    vmem_limit = int(min(vmem_cap // 2, 64 << 20))
    return nb, vmem_limit


def residual_block(x_ncl, params):
    """Pallas forward of ResidualBlock (training-mode BatchNorm), NCL layout."""
    N, Cin, L = x_ncl.shape
    Cout, _, K = params["w1"].shape
    Cin_p = _round_up(Cin, 8)
    Cout_p = _round_up(Cout, 8)
    f32 = jnp.float32

    NB, vmem_limit = _pick_tiles(N, Cin_p, Cout_p, L, K,
                                 jnp.dtype(x_ncl.dtype).itemsize)
    G = N // NB
    grid = (G,)

    # ---- one-time channel padding & weight re-layout (tap-major, ch-minor) ---
    def pad_to(a, axis, size):
        if a.shape[axis] == size:
            return a
        w = [(0, 0)] * a.ndim
        w[axis] = (0, size - a.shape[axis])
        return jnp.pad(a, w)

    xp = pad_to(x_ncl, 1, Cin_p)                               # dtype unchanged
    w1 = pad_to(pad_to(params["w1"].astype(f32), 0, Cout_p), 1, Cin_p)
    w1 = jnp.transpose(w1, (0, 2, 1)).reshape(Cout_p, K * Cin_p)
    w2 = pad_to(pad_to(params["w2"].astype(f32), 0, Cout_p), 1, Cout_p)
    w2 = jnp.transpose(w2, (0, 2, 1)).reshape(Cout_p, K * Cout_p)
    wsc = pad_to(pad_to(params["wsc"][:, :, 0].astype(f32), 0, Cout_p), 1, Cin_p)
    col = lambda v: pad_to(v.astype(f32), 0, Cout_p).reshape(Cout_p, 1)

    cparams = pltpu.CompilerParams(dimension_semantics=("parallel",),
                                   vmem_limit_bytes=vmem_limit)
    tile = lambda c: pl.BlockSpec((NB, c, L), lambda i: (i, 0, 0))
    rep = lambda s: pl.BlockSpec(s, lambda i: (0,) * len(s))   # grid-invariant
    stat_spec = pl.BlockSpec((1, Cout_p, 8), lambda i: (i, 0, 0))
    act_shape = jax.ShapeDtypeStruct((N, Cout_p, L), ACT_DTYPE)
    stat_shape = jax.ShapeDtypeStruct((G, Cout_p, 8), f32)

    # ---- pass 1: conv1 + shortcut 1x1 conv, packed per-tile BN sums ----------
    c1, sc, st1 = pl.pallas_call(
        functools.partial(_conv1_sc_kernel, K),
        grid=grid,
        in_specs=[tile(Cin_p), rep((Cout_p, K * Cin_p)), rep((Cout_p, 1)),
                  rep((Cout_p, Cin_p)), rep((Cout_p, 1))],
        out_specs=(tile(Cout_p), tile(Cout_p), stat_spec),
        out_shape=(act_shape, act_shape, stat_shape),
        compiler_params=cparams,
        cost_estimate=pl.CostEstimate(
            flops=int(2 * N * L * Cout_p * (K * Cin_p + Cin_p)),
            transcendentals=0,
            bytes_accessed=int(N * L * (4 * Cin_p + 4 * Cout_p))),
    )(xp, w1, col(params["b1"]), wsc, col(params["bsc"]))

    # ---- tiny XLA glue: global sums -> per-channel BN affine (scale, shift) --
    cnt = float(N * L)

    def bn_affine(s, q, gamma, beta):
        mean = s / cnt
        var = jnp.maximum(q / cnt - mean * mean, 0.0)
        a = col(gamma) * jax.lax.rsqrt(var + BN_EPS)
        return a, col(beta) - mean * a

    t = jnp.sum(st1, axis=0)                                   # (Cout_p, 8)
    a1, t1 = bn_affine(t[:, 0:1], t[:, 1:2], params["g1"], params["be1"])
    asc, tsc = bn_affine(t[:, 2:3], t[:, 3:4], params["gsc"], params["besc"])

    # ---- pass 2: bn1 + LeakyReLU + conv2, packed per-tile bn2 sums ------------
    c2, st2 = pl.pallas_call(
        functools.partial(_bn1_conv2_kernel, K),
        grid=grid,
        in_specs=[tile(Cout_p), rep((Cout_p, 1)), rep((Cout_p, 1)),
                  rep((Cout_p, K * Cout_p)), rep((Cout_p, 1))],
        out_specs=(tile(Cout_p), stat_spec),
        out_shape=(act_shape, stat_shape),
        compiler_params=cparams,
        cost_estimate=pl.CostEstimate(
            flops=int(2 * N * L * Cout_p * K * Cout_p),
            transcendentals=0,
            bytes_accessed=int(N * L * 4 * Cout_p)),
    )(c1, a1, t1, w2, col(params["b2"]))

    t = jnp.sum(st2, axis=0)
    a2, t2 = bn_affine(t[:, 0:1], t[:, 1:2], params["g2"], params["be2"])

    # ---- pass 3: bn2 + bn_sc affine + residual add + ReLU (pure map) ----------
    out = pl.pallas_call(
        _finalize_kernel,
        grid=grid,
        in_specs=[tile(Cout_p), tile(Cout_p), rep((Cout_p, 1)), rep((Cout_p, 1)),
                  rep((Cout_p, 1)), rep((Cout_p, 1))],
        out_specs=tile(Cout_p),
        out_shape=jax.ShapeDtypeStruct((N, Cout_p, L), x_ncl.dtype),
        compiler_params=cparams,
        cost_estimate=pl.CostEstimate(
            flops=int(6 * N * L * Cout_p),
            transcendentals=0,
            bytes_accessed=int(N * L * Cout_p * 8)),
    )(c2, sc, a2, t2, asc, tsc)

    if Cout_p != Cout:
        out = out[:, :Cout, :]
    return out


# ----------------------------- pure-JAX reference ---------------------------- #

def _conv1d_ref(x, w, b, padding):
    out = jax.lax.conv_general_dilated(
        x, w, window_strides=(1,), padding=[(padding, padding)],
        dimension_numbers=("NCH", "OIH", "NCH"),
        precision=jax.lax.Precision.HIGHEST)
    return out + b[None, :, None]


def _bn_ref(x, g, b):
    mean = x.mean(axis=(0, 2), keepdims=True)
    var = ((x - mean) ** 2).mean(axis=(0, 2), keepdims=True)
    return (x - mean) / jnp.sqrt(var + BN_EPS) * g[None, :, None] + b[None, :, None]


def residual_block_ref(x, p):
    h = _conv1d_ref(x, p["w1"], p["b1"], (p["w1"].shape[2] - 1) // 2)
    h = _bn_ref(h, p["g1"], p["be1"])
    h = jnp.where(h > 0, h, LEAKY_SLOPE * h)
    h = _conv1d_ref(h, p["w2"], p["b2"], (p["w2"].shape[2] - 1) // 2)
    h = _bn_ref(h, p["g2"], p["be2"])
    sc = _conv1d_ref(x, p["wsc"], p["bsc"], 0)
    sc = _bn_ref(sc, p["gsc"], p["besc"])
    return jnp.maximum(h + sc, 0.0)


# ----------------------------------- main ------------------------------------ #

if __name__ == "__main__":
    N, Cin, Cout, L, K = 8, 4, 8, 128, 3
    key = jax.random.PRNGKey(0)
    k_x, k1, k2, k3, k4, k5, k6 = jax.random.split(key, 7)

    def uinit(k, shape, fan_in):
        bound = 1.0 / float(np.sqrt(fan_in))
        return jax.random.uniform(k, shape, jnp.float32, -bound, bound)

    params = dict(
        w1=uinit(k1, (Cout, Cin, K), Cin * K), b1=uinit(k2, (Cout,), Cin * K),
        g1=jnp.ones((Cout,), jnp.float32), be1=jnp.zeros((Cout,), jnp.float32),
        w2=uinit(k3, (Cout, Cout, K), Cout * K), b2=uinit(k4, (Cout,), Cout * K),
        g2=jnp.ones((Cout,), jnp.float32), be2=jnp.zeros((Cout,), jnp.float32),
        wsc=uinit(k5, (Cout, Cin, 1), Cin), bsc=uinit(k6, (Cout,), Cin),
        gsc=jnp.ones((Cout,), jnp.float32), besc=jnp.zeros((Cout,), jnp.float32),
    )

    x = jax.random.normal(k_x, (N, Cin, L), jnp.float32)

    out = jax.block_until_ready(residual_block(x, params))
    ref = jax.block_until_ready(residual_block_ref(x, params))

    assert out.shape == (N, Cout, L), out.shape
    # bf16 inter-pass activations -> slightly looser tolerance than pure f32.
    np.testing.assert_allclose(np.asarray(out), np.asarray(ref),
                               atol=3e-2, rtol=3e-2)
    print("KERNEL_OK")
</pallas_src>

<mosaic_0001>
module attributes {stable_mosaic.version = 11 : i64} {
  func.func @_conv1_sc_kernel(%arg0: i32, %arg1: memref<4x8x128xf32, #tpu.memory_space<vmem>>, %arg2: memref<8x24xf32, #tpu.memory_space<vmem>>, %arg3: memref<8x1xf32, #tpu.memory_space<vmem>>, %arg4: memref<8x8xf32, #tpu.memory_space<vmem>>, %arg5: memref<8x1xf32, #tpu.memory_space<vmem>>, %arg6: memref<4x8x128xbf16, #tpu.memory_space<vmem>>, %arg7: memref<4x8x128xbf16, #tpu.memory_space<vmem>>, %arg8: memref<1x8x8xf32, #tpu.memory_space<vmem>>) attributes {dimension_semantics = [#tpu.dimension_semantics<parallel>], iteration_bounds = array<i64: 2>, scalar_prefetch = 0 : i64, scratch_operands = 0 : i64, tpu.core_type = #tpu.core_type<tc>, window_params = [{transform_indices = @transform_0, window_bounds = array<i64: 4, 8, 128>}, {pipeline_mode = #tpu.pipeline_mode<synchronous>, transform_indices = @transform_1, window_bounds = array<i64: 8, 24>}, {pipeline_mode = #tpu.pipeline_mode<synchronous>, transform_indices = @transform_2, window_bounds = array<i64: 8, 1>}, {pipeline_mode = #tpu.pipeline_mode<synchronous>, transform_indices = @transform_3, window_bounds = array<i64: 8, 8>}, {pipeline_mode = #tpu.pipeline_mode<synchronous>, transform_indices = @transform_4, window_bounds = array<i64: 8, 1>}, {transform_indices = @transform_5, window_bounds = array<i64: 4, 8, 128>}, {transform_indices = @transform_6, window_bounds = array<i64: 4, 8, 128>}, {transform_indices = @transform_7, window_bounds = array<i64: 1, 8, 8>}]} {
    %c0 = arith.constant 0 : index
    %c0_0 = arith.constant 0 : index
    %c0_1 = arith.constant 0 : index
    %0 = vector.load %arg1[%c0, %c0_0, %c0_1] : memref<4x8x128xf32, #tpu.memory_space<vmem>>, vector<4x8x128xf32>
    %1 = tpu.iota {dimensions = array<i32: 2>} : vector<1x1x128xi32>
    %c1_i32 = arith.constant 1 : i32
    %2 = tpu.dynamic_rotate %0 by %c1_i32 dim 2 : vector<4x8x128xf32>, i32 -> vector<4x8x128xf32>
    %c1_i32_2 = arith.constant 1 : i32
    %3 = vector.broadcast %c1_i32_2 : i32 to vector<1x1x128xi32>
    %4 = arith.cmpi sge, %1, %3 : vector<1x1x128xi32>
    %cst = arith.constant 0.000000e+00 : f32
    %5 = vector.shape_cast %4 : vector<1x1x128xi1> to vector<1x1x128xi1>
    %6 = vector.broadcast %5 : vector<1x1x128xi1> to vector<4x8x128xi1>
    %7 = vector.broadcast %cst : f32 to vector<4x8x128xf32>
    %8 = arith.select %6, %2, %7 : vector<4x8x128xi1>, vector<4x8x128xf32>
    %c127_i32 = arith.constant 127 : i32
    %9 = tpu.dynamic_rotate %0 by %c127_i32 dim 2 : vector<4x8x128xf32>, i32 -> vector<4x8x128xf32>
    %c127_i32_3 = arith.constant 127 : i32
    %10 = vector.broadcast %c127_i32_3 : i32 to vector<1x1x128xi32>
    %11 = arith.cmpi slt, %1, %10 : vector<1x1x128xi32>
    %cst_4 = arith.constant 0.000000e+00 : f32
    %12 = vector.shape_cast %11 : vector<1x1x128xi1> to vector<1x1x128xi1>
    %13 = vector.broadcast %12 : vector<1x1x128xi1> to vector<4x8x128xi1>
    %14 = vector.broadcast %cst_4 : f32 to vector<4x8x128xf32>
    %15 = arith.select %13, %9, %14 : vector<4x8x128xi1>, vector<4x8x128xf32>
    %16 = tpu.concatenate %8, %0, %15 in 1 : vector<4x8x128xf32>, vector<4x8x128xf32>, vector<4x8x128xf32> -> vector<4x24x128xf32>
    %c0_5 = arith.constant 0 : index
    %c0_6 = arith.constant 0 : index
    %17 = vector.load %arg2[%c0_5, %c0_6] : memref<8x24xf32, #tpu.memory_space<vmem>>, vector<8x24xf32>
    %18 = vector.shape_cast %17 : vector<8x24xf32> to vector<1x8x24xf32>
    %19 = vector.shape_cast %18 : vector<1x8x24xf32> to vector<1x8x24xf32>
    %20 = vector.broadcast %19 : vector<1x8x24xf32> to vector<4x8x24xf32>
    "tpu.trace_start"() <{level = 10 : i32, message = "nok,nkl->nol"}> : () -> ()
    %cst_7 = arith.constant dense<0.000000e+00> : vector<4x8x128xf32>
    %21 = tpu.matmul %20, %16, %cst_7 {dimension_numbers = #tpu.dot_dimension_numbers<[2], [1], [1], [2], [0, 0, 0, 1, 1, 2], [0], [0]>} : vector<4x8x24xf32>, vector<4x24x128xf32>, vector<4x8x128xf32> -> vector<4x8x128xf32>
    "tpu.trace_stop"() : () -> ()
    %c0_8 = arith.constant 0 : index
    %c0_9 = arith.constant 0 : index
    %22 = vector.load %arg3[%c0_8, %c0_9] : memref<8x1xf32, #tpu.memory_space<vmem>>, vector<8x1xf32>
    %23 = vector.shape_cast %22 : vector<8x1xf32> to vector<1x8x1xf32>
    %24 = vector.broadcast %23 : vector<1x8x1xf32> to vector<4x8x128xf32>
    %25 = arith.addf %21, %24 : vector<4x8x128xf32>
    %c0_10 = arith.constant 0 : index
    %c0_11 = arith.constant 0 : index
    %26 = vector.load %arg4[%c0_10, %c0_11] : memref<8x8xf32, #tpu.memory_space<vmem>>, vector<8x8xf32>
    %27 = vector.shape_cast %26 : vector<8x8xf32> to vector<1x8x8xf32>
    %28 = vector.shape_cast %27 : vector<1x8x8xf32> to vector<1x8x8xf32>
    %29 = vector.broadcast %28 : vector<1x8x8xf32> to vector<4x8x8xf32>
    "tpu.trace_start"() <{level = 10 : i32, message = "nok,nkl->nol"}> : () -> ()
    %cst_12 = arith.constant dense<0.000000e+00> : vector<4x8x128xf32>
    %30 = tpu.matmul %29, %0, %cst_12 {dimension_numbers = #tpu.dot_dimension_numbers<[2], [1], [1], [2], [0, 0, 0, 1, 1, 2], [0], [0]>} : vector<4x8x8xf32>, vector<4x8x128xf32>, vector<4x8x128xf32> -> vector<4x8x128xf32>
    "tpu.trace_stop"() : () -> ()
    %c0_13 = arith.constant 0 : index
    %c0_14 = arith.constant 0 : index
    %31 = vector.load %arg5[%c0_13, %c0_14] : memref<8x1xf32, #tpu.memory_space<vmem>>, vector<8x1xf32>
    %32 = vector.shape_cast %31 : vector<8x1xf32> to vector<1x8x1xf32>
    %33 = vector.broadcast %32 : vector<1x8x1xf32> to vector<4x8x128xf32>
    %34 = arith.addf %30, %33 : vector<4x8x128xf32>
    %35 = arith.truncf %25 : vector<4x8x128xf32> to vector<4x8x128xbf16>
    %c0_15 = arith.constant 0 : index
    %c0_16 = arith.constant 0 : index
    %c0_17 = arith.constant 0 : index
    %36 = vector.load %arg6[%c0_15, %c0_16, %c0_17] : memref<4x8x128xbf16, #tpu.memory_space<vmem>>, vector<4x8x128xbf16>
    tpu.vector_store %arg6[%c0_15, %c0_16, %c0_17], %35 {strides = array<i32>} : memref<4x8x128xbf16, #tpu.memory_space<vmem>>, vector<4x8x128xbf16>,
    %37 = arith.truncf %34 : vector<4x8x128xf32> to vector<4x8x128xbf16>
    %c0_18 = arith.constant 0 : index
    %c0_19 = arith.constant 0 : index
    %c0_20 = arith.constant 0 : index
    %38 = vector.load %arg7[%c0_18, %c0_19, %c0_20] : memref<4x8x128xbf16, #tpu.memory_space<vmem>>, vector<4x8x128xbf16>
    tpu.vector_store %arg7[%c0_18, %c0_19, %c0_20], %37 {strides = array<i32>} : memref<4x8x128xbf16, #tpu.memory_space<vmem>>, vector<4x8x128xbf16>,
    %cst_21 = arith.constant dense<0.000000e+00> : vector<8xf32>
    %39 = vector.multi_reduction <add>, %25, %cst_21 [0, 2] : vector<4x8x128xf32> to vector<8xf32>
    %40 = vector.shape_cast %39 : vector<8xf32> to vector<1x8x1xf32>
    %41 = vector.shape_cast %40 : vector<1x8x1xf32> to vector<8x1xf32>
    %42 = arith.mulf %25, %25 : vector<4x8x128xf32>
    %cst_22 = arith.constant dense<0.000000e+00> : vector<8xf32>
    %43 = vector.multi_reduction <add>, %42, %cst_22 [0, 2] : vector<4x8x128xf32> to vector<8xf32>
    %44 = vector.shape_cast %43 : vector<8xf32> to vector<1x8x1xf32>
    %45 = vector.shape_cast %44 : vector<1x8x1xf32> to vector<8x1xf32>
    %cst_23 = arith.constant dense<0.000000e+00> : vector<8xf32>
    %46 = vector.multi_reduction <add>, %34, %cst_23 [0, 2] : vector<4x8x128xf32> to vector<8xf32>
    %47 = vector.shape_cast %46 : vector<8xf32> to vector<1x8x1xf32>
    %48 = vector.shape_cast %47 : vector<1x8x1xf32> to vector<8x1xf32>
    %49 = arith.mulf %34, %34 : vector<4x8x128xf32>
    %cst_24 = arith.constant dense<0.000000e+00> : vector<8xf32>
    %50 = vector.multi_reduction <add>, %49, %cst_24 [0, 2] : vector<4x8x128xf32> to vector<8xf32>
    %51 = vector.shape_cast %50 : vector<8xf32> to vector<1x8x1xf32>
    %52 = vector.shape_cast %51 : vector<1x8x1xf32> to vector<8x1xf32>
    %cst_25 = arith.constant 0.000000e+00 : f32
    %53 = vector.broadcast %cst_25 : f32 to vector<8x4xf32>
    %54 = tpu.concatenate %41, %45, %48, %52, %53 in 1 : vector<8x1xf32>, vector<8x1xf32>, vector<8x1xf32>, vector<8x1xf32>, vector<8x4xf32> -> vector<8x8xf32>
    %c0_26 = arith.constant 0 : index
    %c0_27 = arith.constant 0 : index
    %c0_28 = arith.constant 0 : index
    %55 = vector.load %arg8[%c0_26, %c0_27, %c0_28] : memref<1x8x8xf32, #tpu.memory_space<vmem>>, vector<1x8x8xf32>
    %56 = vector.shape_cast %55 : vector<1x8x8xf32> to vector<8x8xf32>
    %57 = vector.shape_cast %54 : vector<8x8xf32> to vector<1x8x8xf32>
    tpu.vector_store %arg8[%c0_26, %c0_27, %c0_28], %57 {strides = array<i32>} : memref<1x8x8xf32, #tpu.memory_space<vmem>>, vector<1x8x8xf32>,
    return
  }
  func.func @transform_0(%arg0: i32) -> (i32, i32, i32) {
    %c0_i32 = arith.constant 0 : i32
    %c0_i32_0 = arith.constant 0 : i32
    %c0_i32_1 = arith.constant 0 : i32
    return %arg0, %c0_i32, %c0_i32_0 : i32, i32, i32
  }
  func.func @transform_1(%arg0: i32) -> (i32, i32) {
    %c0_i32 = arith.constant 0 : i32
    %c0_i32_0 = arith.constant 0 : i32
    %c0_i32_1 = arith.constant 0 : i32
    return %c0_i32, %c0_i32_0 : i32, i32
  }
  func.func @transform_2(%arg0: i32) -> (i32, i32) {
    %c0_i32 = arith.constant 0 : i32
    %c0_i32_0 = arith.constant 0 : i32
    %c0_i32_1 = arith.constant 0 : i32
    return %c0_i32, %c0_i32_0 : i32, i32
  }
  func.func @transform_3(%arg0: i32) -> (i32, i32) {
    %c0_i32 = arith.constant 0 : i32
    %c0_i32_0 = arith.constant 0 : i32
    %c0_i32_1 = arith.constant 0 : i32
    return %c0_i32, %c0_i32_0 : i32, i32
  }
  func.func @transform_4(%arg0: i32) -> (i32, i32) {
    %c0_i32 = arith.constant 0 : i32
    %c0_i32_0 = arith.constant 0 : i32
    %c0_i32_1 = arith.constant 0 : i32
    return %c0_i32, %c0_i32_0 : i32, i32
  }
  func.func @transform_5(%arg0: i32) -> (i32, i32, i32) {
    %c0_i32 = arith.constant 0 : i32
    %c0_i32_0 = arith.constant 0 : i32
    %c0_i32_1 = arith.constant 0 : i32
    return %arg0, %c0_i32, %c0_i32_0 : i32, i32, i32
  }
  func.func @transform_6(%arg0: i32) -> (i32, i32, i32) {
    %c0_i32 = arith.constant 0 : i32
    %c0_i32_0 = arith.constant 0 : i32
    %c0_i32_1 = arith.constant 0 : i32
    return %arg0, %c0_i32, %c0_i32_0 : i32, i32, i32
  }
  func.func @transform_7(%arg0: i32) -> (i32, i32, i32) {
    %c0_i32 = arith.constant 0 : i32
    %c0_i32_0 = arith.constant 0 : i32
    %c0_i32_1 = arith.constant 0 : i32
    return %arg0, %c0_i32, %c0_i32_0 : i32, i32, i32
  }
}

</mosaic_0001>

<llo_original>
// kernel: tpu_custom_call.1
$region0: #{tpu_custom_call.1}
  #allocation0 [shape = 'u32[]', space=smem, size = 0x4, offset = 0x4, fixed_abs, tag = 'smem constant byte address 0x4 - core index']
  #allocation1 [shape = 'u32[72,128]{1,0:T(1,128)}', space=vmem, size = 0x9000, scoped, tag = 'internal scratch']
  %s0 = inlined_call_operand.hbm [shape: f32[8,8,128], index: 0, kind: input, shape index: {}]
  %s1 = inlined_call_operand.vmem [shape: f32[8,24], index: 1, kind: input, shape index: {}]
  %s2 = inlined_call_operand.vmem [shape: f32[8,1], index: 2, kind: input, shape index: {}]
  %s3 = inlined_call_operand.vmem [shape: f32[8,8], index: 3, kind: input, shape index: {}]
  %s4 = inlined_call_operand.vmem [shape: f32[8,1], index: 4, kind: input, shape index: {}]
  %s5 = inlined_call_operand.hbm [shape: bf16[8,8,128], index: 5, kind: output, shape index: {0}]
  %s6 = inlined_call_operand.hbm [shape: bf16[8,8,128], index: 6, kind: output, shape index: {1}]
  %s7 = inlined_call_operand.hbm [shape: f32[2,8,8], index: 7, kind: output, shape index: {2}]
  %8 = xla_tuple %s5, %s6, %s7
  %s9 = sld [smem:[#allocation0]]
  $region73: #{tpu_custom_call.1} parent=0
    _
  %s11 = ssub.s32 1, %s9
  %s12 = scalar_select 0, %s11, %s9
  $region1: #{tpu_custom_call.1} parent=0
    #allocation2 [shape = 'u8[32768]{0}', space=vmem, size = 0x8000, scoped, tag = 'input window, operand 0']
    #allocation3 [shape = 's32[2]{0}', space=sflag, size = 0x8, scoped, tag = 'scoped memory for tpu_custom_call.1']
    #allocation4 [shape = 's32[2]{0}', space=sflag, size = 0x8, scoped, tag = 'scoped memory for tpu_custom_call.1']
    #allocation5 [shape = 'u8[16384]{0}', space=vmem, size = 0x4000, scoped, tag = 'output window, operand 0']
    #allocation6 [shape = 'u8[16384]{0}', space=vmem, size = 0x4000, scoped, tag = 'output window, operand 1']
    #allocation7 [shape = 's32[2]{0}', space=sflag, size = 0x8, scoped, tag = 'scoped memory for tpu_custom_call.1']
    #allocation8 [shape = 'u8[8192]{0}', space=vmem, size = 0x2000, scoped, tag = 'output window, operand 2']
    %13 = vsyncpa [#allocation3], 0
    %s14 = scalar_lea.sflag [#allocation3], 1
    %15 = vsyncpa %s14, 0
    %16 = vsyncpa [#allocation4], 0
    %s17 = scalar_lea.sflag [#allocation4], 1
    %18 = vsyncpa %s17, 0
    %19 = vsyncpa [#allocation7], 0
    %s20 = scalar_lea.sflag [#allocation7], 1
    %21 = vsyncpa %s20, 0
    loop: start=0, step=1, limit=4
    $region2: #{tpu_custom_call.1} parent=1 // loop_pre_header
      _
    $region3: #{tpu_custom_call.1} parent=1 // loop_header
      %s23 = sphi 0, %s27
      %p24 = scmp.ge.s32.totalorder %s23, 4
      %s33 = sphi 0, %s35
      %s36 = sphi 0, %s33
      %s37 = sphi 0, %s36
      %s53 = sphi 0, %s37
      %s57 = sphi 0, %s57
      %s59 = sphi 0, %s57
      %s60 = sphi 0, %s59
      %s74 = sphi 0, %s60
      %s78 = sphi 0, %s78
      %s80 = sphi 0, %s78
      %s81 = sphi 0, %s80
      %s95 = sphi 0, %s81
      %s99 = sphi 0, %s99
      %s101 = sphi 0, %s99
      %s102 = sphi 0, %s101
      %s116 = sphi 0, %s102
      %s120 = sphi 0, %s120
      %s122 = sphi 0, %s120
      %s123 = sphi 0, %s122
      %s137 = sphi 0, %s123
      %s143 = sphi 0, %s145
      %s146 = sphi 0, %s143
      %s147 = sphi 0, %s146
      %s163 = sphi 0, %s147
      %s169 = sphi 0, %s171
      %s172 = sphi 0, %s169
      %s173 = sphi 0, %s172
      %s189 = sphi 0, %s173
      %s195 = sphi 0, %s197
      %s198 = sphi 0, %s195
      %s199 = sphi 0, %s198
      %s215 = sphi 0, %s199
    $region4: #{tpu_custom_call.1} parent=1 // loop_header_branch
      %26 = sbr.rel (%p24) target = $region8
    $region5: #{tpu_custom_call.1} parent=1 // loop_body
      %s28 = ssub.s32 %s23, 1
      %s29 = ssub.s32 %s23, 2
      %s30 = sadd.s32 %s23, 1
      %s31 = ssub.s32 %s23, %s30
      %p32 = scmp.eq.s32.totalorder %s31, 0
      %s34 = sadd.s32 %s33, 1
      %s35 = scalar_select %p32, %s33, %s34
      %p38 = pneg %p32
      %p39 = scmp.eq.s32.totalorder %s23, 1
      %p40 = por %p38, %p39
      %p41 = scmp.ne.s32.totalorder %s33, %s36
      %p42 = scmp.eq.s32.totalorder %s23, 0
      %p43 = por %p41, %p42
      %p44 = scmp.ne.s32.totalorder %s33, %s36
      %p45 = scmp.eq.s32.totalorder %s28, 1
      %p46 = por %p44, %p45
      %p47 = scmp.ne.s32.totalorder %s36, %s37
      %p48 = scmp.eq.s32.totalorder %s28, 0
      %p49 = por %p47, %p48
      %p50 = scmp.ne.s32.totalorder %s36, %s37
      %p51 = scmp.eq.s32.totalorder %s29, 1
      %p52 = por %p50, %p51
      %p54 = scmp.ne.s32.totalorder %s37, %s53
      %p55 = scmp.eq.s32.totalorder %s29, 0
      %p56 = por %p54, %p55
      %s58 = sadd.s32 %s57, 1
      %p61 = scmp.eq.s32.totalorder %s23, 1
      %p62 = scmp.ne.s32.totalorder %s57, %s59
      %p63 = scmp.eq.s32.totalorder %s23, 0
      %p64 = por %p62, %p63
      %p65 = scmp.ne.s32.totalorder %s57, %s59
      %p66 = scmp.eq.s32.totalorder %s28, 1
      %p67 = por %p65, %p66
      %p68 = scmp.ne.s32.totalorder %s59, %s60
      %p69 = scmp.eq.s32.totalorder %s28, 0
      %p70 = por %p68, %p69
      %p71 = scmp.ne.s32.totalorder %s59, %s60
      %p72 = scmp.eq.s32.totalorder %s29, 1
      %p73 = por %p71, %p72
      %p75 = scmp.ne.s32.totalorder %s60, %s74
      %p76 = scmp.eq.s32.totalorder %s29, 0
      %p77 = por %p75, %p76
      %s79 = sadd.s32 %s78, 1
      %p82 = scmp.eq.s32.totalorder %s23, 1
      %p83 = scmp.ne.s32.totalorder %s78, %s80
      %p84 = scmp.eq.s32.totalorder %s23, 0
      %p85 = por %p83, %p84
      %p86 = scmp.ne.s32.totalorder %s78, %s80
      %p87 = scmp.eq.s32.totalorder %s28, 1
      %p88 = por %p86, %p87
      %p89 = scmp.ne.s32.totalorder %s80, %s81
      %p90 = scmp.eq.s32.totalorder %s28, 0
      %p91 = por %p89, %p90
      %p92 = scmp.ne.s32.totalorder %s80, %s81
      %p93 = scmp.eq.s32.totalorder %s29, 1
      %p94 = por %p92, %p93
      %p96 = scmp.ne.s32.totalorder %s81, %s95
      %p97 = scmp.eq.s32.totalorder %s29, 0
      %p98 = por %p96, %p97
      %s100 = sadd.s32 %s99, 1
      %p103 = scmp.eq.s32.totalorder %s23, 1
      %p104 = scmp.ne.s32.totalorder %s99, %s101
      %p105 = scmp.eq.s32.totalorder %s23, 0
      %p106 = por %p104, %p105
      %p107 = scmp.ne.s32.totalorder %s99, %s101
      %p108 = scmp.eq.s32.totalorder %s28, 1
      %p109 = por %p107, %p108
      %p110 = scmp.ne.s32.totalorder %s101, %s102
      %p111 = scmp.eq.s32.totalorder %s28, 0
      %p112 = por %p110, %p111
      %p113 = scmp.ne.s32.totalorder %s101, %s102
      %p114 = scmp.eq.s32.totalorder %s29, 1
      %p115 = por %p113, %p114
      %p117 = scmp.ne.s32.totalorder %s102, %s116
      %p118 = scmp.eq.s32.totalorder %s29, 0
      %p119 = por %p117, %p118
      %s121 = sadd.s32 %s120, 1
      %p124 = scmp.eq.s32.totalorder %s23, 1
      %p125 = scmp.ne.s32.totalorder %s120, %s122
      %p126 = scmp.eq.s32.totalorder %s23, 0
      %p127 = por %p125, %p126
      %p128 = scmp.ne.s32.totalorder %s120, %s122
      %p129 = scmp.eq.s32.totalorder %s28, 1
      %p130 = por %p128, %p129
      %p131 = scmp.ne.s32.totalorder %s122, %s123
      %p132 = scmp.eq.s32.totalorder %s28, 0
      %p133 = por %p131, %p132
      %p134 = scmp.ne.s32.totalorder %s122, %s123
      %p135 = scmp.eq.s32.totalorder %s29, 1
      %p136 = por %p134, %p135
      %p138 = scmp.ne.s32.totalorder %s123, %s137
      %p139 = scmp.eq.s32.totalorder %s29, 0
      %p140 = por %p138, %p139
      %s141 = ssub.s32 %s23, %s30
      %p142 = scmp.eq.s32.totalorder %s141, 0
      %s144 = sadd.s32 %s143, 1
      %s145 = scalar_select %p142, %s143, %s144
      %p148 = pneg %p142
      %p149 = scmp.eq.s32.totalorder %s23, 1
      %p150 = por %p148, %p149
      %p151 = scmp.ne.s32.totalorder %s143, %s146
      %p152 = scmp.eq.s32.totalorder %s23, 0
      %p153 = por %p151, %p152
      %p154 = scmp.ne.s32.totalorder %s143, %s146
      %p155 = scmp.eq.s32.totalorder %s28, 1
      %p156 = por %p154, %p155
      %p157 = scmp.ne.s32.totalorder %s146, %s147
      %p158 = scmp.eq.s32.totalorder %s28, 0
      %p159 = por %p157, %p158
      %p160 = scmp.ne.s32.totalorder %s146, %s147
      %p161 = scmp.eq.s32.totalorder %s29, 1
      %p162 = por %p160, %p161
      %p164 = scmp.ne.s32.totalorder %s147, %s163
      %p165 = scmp.eq.s32.totalorder %s29, 0
      %p166 = por %p164, %p165
      %s167 = ssub.s32 %s23, %s30
      %p168 = scmp.eq.s32.totalorder %s167, 0
      %s170 = sadd.s32 %s169, 1
      %s171 = scalar_select %p168, %s169, %s170
      %p174 = pneg %p168
      %p175 = scmp.eq.s32.totalorder %s23, 1
      %p176 = por %p174, %p175
      %p177 = scmp.ne.s32.totalorder %s169, %s172
      %p178 = scmp.eq.s32.totalorder %s23, 0
      %p179 = por %p177, %p178
      %p180 = scmp.ne.s32.totalorder %s169, %s172
      %p181 = scmp.eq.s32.totalorder %s28, 1
      %p182 = por %p180, %p181
      %p183 = scmp.ne.s32.totalorder %s172, %s173
      %p184 = scmp.eq.s32.totalorder %s28, 0
      %p185 = por %p183, %p184
      %p186 = scmp.ne.s32.totalorder %s172, %s173
      %p187 = scmp.eq.s32.totalorder %s29, 1
      %p188 = por %p186, %p187
      %p190 = scmp.ne.s32.totalorder %s173, %s189
      %p191 = scmp.eq.s32.totalorder %s29, 0
      %p192 = por %p190, %p191
      %s193 = ssub.s32 %s23, %s30
      %p194 = scmp.eq.s32.totalorder %s193, 0
      %s196 = sadd.s32 %s195, 1
      %s197 = scalar_select %p194, %s195, %s196
      %p200 = pneg %p194
      %p201 = scmp.eq.s32.totalorder %s23, 1
      %p202 = por %p200, %p201
      %p203 = scmp.ne.s32.totalorder %s195, %s198
      %p204 = scmp.eq.s32.totalorder %s23, 0
      %p205 = por %p203, %p204
      %p206 = scmp.ne.s32.totalorder %s195, %s198
      %p207 = scmp.eq.s32.totalorder %s28, 1
      %p208 = por %p206, %p207
      %p209 = scmp.ne.s32.totalorder %s198, %s199
      %p210 = scmp.eq.s32.totalorder %s28, 0
      %p211 = por %p209, %p210
      %p212 = scmp.ne.s32.totalorder %s198, %s199
      %p213 = scmp.eq.s32.totalorder %s29, 1
      %p214 = por %p212, %p213
      %p216 = scmp.ne.s32.totalorder %s199, %s215
      %p217 = scmp.eq.s32.totalorder %s29, 0
      %p218 = por %p216, %p217
      %p219 = scmp.le.s32.totalorder 1, %s23
      %p220 = scmp.lt.s32.totalorder %s23, 3
      %p221 = pnand %p219, %p220
      %p222 = pneg %p221
      // Predicated region
      $region9: #{tpu_custom_call.1} parent=5 // pred_check
        _
      $region10: #{tpu_custom_call.1} parent=5 // pred_check_branch
        %224 = sbr.rel (%p221) target = $region12
      $region11: #{tpu_custom_call.1} parent=5 // pred_region
        %s225 = ssub.s32 %s23, 1
        // Predicated region
        $region13: #{tpu_custom_call.1} parent=11 // pred_check
          %p226 = pneg %p70
        $region14: #{tpu_custom_call.1} parent=11 // pred_check_branch
          %228 = sbr.rel (%p226) target = $region16
        $region15: #{tpu_custom_call.1} parent=11 // pred_region
          _
        $region16: #{tpu_custom_call.1} parent=11 // pred_fallthru
          _
        // Predicated region
        $region17: #{tpu_custom_call.1} parent=11 // pred_check
          %p229 = pneg %p91
        $region18: #{tpu_custom_call.1} parent=11 // pred_check_branch
          %231 = sbr.rel (%p229) target = $region20
        $region19: #{tpu_custom_call.1} parent=11 // pred_region
          _
        $region20: #{tpu_custom_call.1} parent=11 // pred_fallthru
          _
        // Predicated region
        $region21: #{tpu_custom_call.1} parent=11 // pred_check
          %p232 = pneg %p112
        $region22: #{tpu_custom_call.1} parent=11 // pred_check_branch
          %234 = sbr.rel (%p232) target = $region24
        $region23: #{tpu_custom_call.1} parent=11 // pred_region
          _
        $region24: #{tpu_custom_call.1} parent=11 // pred_fallthru
          _
        // Predicated region
        $region25: #{tpu_custom_call.1} parent=11 // pred_check
          %p235 = pneg %p133
        $region26: #{tpu_custom_call.1} parent=11 // pred_check_branch
          %237 = sbr.rel (%p235) target = $region28
        $region27: #{tpu_custom_call.1} parent=11 // pred_region
          _
        $region28: #{tpu_custom_call.1} parent=11 // pred_fallthru
          _
      $region12: #{tpu_custom_call.1} parent=5 // pred_fallthru
        _
      %p238 = scmp.lt.s32.totalorder %s23, 2
      // Predicated region
      $region29: #{tpu_custom_call.1} parent=5 // pred_check
        %p239 = pneg %p238
      $region30: #{tpu_custom_call.1} parent=5 // pred_check_branch
        %241 = sbr.rel (%p239) target = $region32
      $region31: #{tpu_custom_call.1} parent=5 // pred_region
        // Predicated region
        $region33: #{tpu_custom_call.1} parent=31 // pred_check
          %p242 = pneg %p43
        $region34: #{tpu_custom_call.1} parent=31 // pred_check_branch
          %244 = sbr.rel (%p242) target = $region36
        $region35: #{tpu_custom_call.1} parent=31 // pred_region
          %s245 = sand.u32 %s33, 1
          %s246 = scalar_lea.sflag [#allocation3], %s245
          %s247 = sand.u32 %s33, 1
          %s248 = smul.addr %s247, 32
          %s249 = scalar_lea.vmem [#allocation2], %s248
          %s250 = smul.u32 4, %s23
          %252 = vsyncadd %s246, 0
          %s253 = smul.addr %s250, 8
          %s254 = scalar_lea.hbm %s0, %s253
          %s255 = sshll.u32 %s254, 4
          %s256 = int_to_ptr.hbm [resolvable:$true] %s255
          %s257 = sshll.u32 %s249, 4
          %s258 = int_to_ptr.vmem [resolvable:$true] %s257
          %263 = dma.hbm_to_vmem [thread:$0]  %s256, 512, %s258, %s246, 128, 128, 8
        $region36: #{tpu_custom_call.1} parent=31 // pred_fallthru
          _
      $region32: #{tpu_custom_call.1} parent=5 // pred_fallthru
        _
      %p264 = scmp.le.s32.totalorder 1, %s23
      %p265 = scmp.lt.s32.totalorder %s23, 3
      %p266 = pnand %p264, %p265
      %p267 = pneg %p266
      // Predicated region
      $region37: #{tpu_custom_call.1} parent=5 // pred_check
        _
      $region38: #{tpu_custom_call.1} parent=5 // pred_check_branch
        %269 = sbr.rel (%p266) target = $region40
      $region39: #{tpu_custom_call.1} parent=5 // pred_region
        %s270 = ssub.s32 %s23, 1
        %s271 = sand.u32 %s36, 1
        %s272 = scalar_lea.sflag [#allocation3], %s271
        %s273 = sand.u32 %s36, 1
        %s274 = smul.addr %s273, 32
        %s275 = scalar_lea.vmem [#allocation2], %s274
        // Predicated region
        $region41: #{tpu_custom_call.1} parent=39 // pred_check
          %p276 = pneg %p49
        $region42: #{tpu_custom_call.1} parent=39 // pred_check_branch
          %278 = sbr.rel (%p276) target = $region44
        $region43: #{tpu_custom_call.1} parent=39 // pred_region
          %280 = dma.done %s272, 512
        $region44: #{tpu_custom_call.1} parent=39 // pred_fallthru
          _
        %s281 = sand.u32 %s36, 1
        %s282 = scalar_lea.sflag [#allocation3], %s281
        %s283 = sand.u32 %s36, 1
        %s284 = smul.addr %s283, 32
        %s285 = scalar_lea.vmem [#allocation2], %s284
        %p286 = pneg %p49
        %p287 = pneg %p46
        %p288 = pneg %p70
        %p289 = pneg %p67
        %p290 = pneg %p91
        %p291 = pneg %p88
        %p292 = pneg %p112
        %p293 = pneg %p109
        %p294 = pneg %p133
        %p295 = pneg %p130
        %p296 = pneg %p159
        %p297 = pneg %p156
        %s298 = sand.u32 %s146, 1
        %s299 = scalar_lea.sflag [#allocation4], %s298
        %s300 = sand.u32 %s146, 1
        %s301 = smul.addr %s300, 16
        %s302 = scalar_lea.vmem [#allocation5], %s301
        %p303 = pneg %p185
        %p304 = pneg %p182
        %s305 = sand.u32 %s28, 1
        %s306 = scalar_lea.sflag [#allocation7], %s305
        %s307 = sand.u32 %s172, 1
        %s308 = smul.addr %s307, 16
        %s309 = scalar_lea.vmem [#allocation6], %s308
        %p310 = pneg %p211
        %p311 = pneg %p208
        %s312 = sand.u32 %s28, 1
        %s313 = scalar_lea.sflag [#allocation7], %s312
        %s314 = sand.u32 %s198, 1
        %s315 = smul.addr %s314, 8
        %s316 = scalar_lea.vmem [#allocation8], %s315
        %s317 = smul.u32 4, %s28
        %s318 = smul.u32 4, %s28
        %s319 = smul.u32 4, %s28
        %v320 = vld [vmem:[%s275] sm:$0xff]
        %v321 = vld [vmem:[%s275 + $0x8] sm:$0xff]
        %v322 = vld [vmem:[%s275 + $0x10] sm:$0xff]
        %v323 = vld [vmem:[%s275 + $0x18] sm:$0xff]
        %v324 = vlaneseq
        %v325 = vand.u32 %v324, 127
        %326 = vrot.lane.b32.xlu0 %v320, 1
        %v327 = vpop.permute.xlu0 %326
        %328 = vrot.lane.b32.xlu0 %v321, 1
        %v329 = vpop.permute.xlu0 %328
        %330 = vrot.lane.b32.xlu0 %v322, 1
        %v331 = vpop.permute.xlu0 %330
        %332 = vrot.lane.b32.xlu0 %v323, 1
        %v333 = vpop.permute.xlu0 %332
        %vm334 = vcmp.ge.s32.totalorder %v325, 1
        %v335 = vsel %vm334, 1, 0
        %vm336 = vcmp.eq.s32.totalorder %v335, 1
        %v337 = vsel %vm336, %v327, 0.0
        %v338 = vsel %vm336, %v329, 0.0
        %v339 = vsel %vm336, %v331, 0.0
        %v340 = vsel %vm336, %v333, 0.0
        %341 = vrot.lane.b32.xlu0 %v320, 127
        %v342 = vpop.permute.xlu0 %341
        %343 = vrot.lane.b32.xlu0 %v321, 127
        %v344 = vpop.permute.xlu0 %343
        %345 = vrot.lane.b32.xlu0 %v322, 127
        %v346 = vpop.permute.xlu0 %345
        %347 = vrot.lane.b32.xlu0 %v323, 127
        %v348 = vpop.permute.xlu0 %347
        %vm349 = vcmp.lt.s32.totalorder %v325, 127
        %v350 = vsel %vm349, 1, 0
        %vm351 = vcmp.eq.s32.totalorder %v350, 1
        %v352 = vsel %vm351, %v342, 0.0
        %v353 = vsel %vm351, %v344, 0.0
        %v354 = vsel %vm351, %v346, 0.0
        %v355 = vsel %vm351, %v348, 0.0
        %v356 = vld [vmem:[%s1] sm:$0xff]
        %v357 = vld [vmem:[%s2] sm:$0xff]
        %359 = vset.pattern.permute.xlu0 0
        %360 = vperm.xlu0 %359, %v357
        %v361 = vpop.permute.xlu0 %360
        %vm363 = vcmask 195584
        %v365 = vsel %vm363, %v356, 0
        %367 = vmatpush.msra.mxu0 0.0
        %368 = vmatpush.msra.mxu0 0.0
        %369 = vmatpush.msra.mxu0 0.0
        %370 = vmatpush.msra.mxu0 0.0
        %371 = vmatpush.msra.mxu0 0.0
        %372 = vmatpush.msra.mxu0 0.0
        %373 = vmatpush.msra.mxu0 0.0
        %374 = vmatpush.msra.mxu0 0.0
        %375 = vmatpush.msra.mxu0 0.0
        %376 = vmatpush.msra.mxu0 0.0
        %377 = vmatpush.msra.mxu0 0.0
        %378 = vmatpush.msra.mxu0 0.0
        %379 = vmatpush.msra.mxu0 0.0
        %380 = vmatpush.msra.mxu0 %v352
        %381 = vmatpush.msra.mxu0 %v320
        %382 = vmatpush.msra.mxu0 %v337
        %383 = vmatmul.f32.gmra.mxu0 %v365
        %v384 = vpop.f32.mrf.mxu0
        %v385 = vadd.f32 %v361, %v384
        %386 = vdwg.mxu0
        %387 = vmatpush.msra.mxu0 0.0
        %388 = vmatpush.msra.mxu0 0.0
        %389 = vmatpush.msra.mxu0 0.0
        %390 = vmatpush.msra.mxu0 0.0
        %391 = vmatpush.msra.mxu0 0.0
        %392 = vmatpush.msra.mxu0 0.0
        %393 = vmatpush.msra.mxu0 0.0
        %394 = vmatpush.msra.mxu0 0.0
        %395 = vmatpush.msra.mxu0 0.0
        %396 = vmatpush.msra.mxu0 0.0
        %397 = vmatpush.msra.mxu0 0.0
        %398 = vmatpush.msra.mxu0 0.0
        %399 = vmatpush.msra.mxu0 0.0
        %400 = vmatpush.msra.mxu0 %v353
        %401 = vmatpush.msra.mxu0 %v321
        %402 = vmatpush.msra.mxu0 %v338
        %403 = vmatmul.f32.gmra.mxu0 %v365
        %v404 = vpop.f32.mrf.mxu0
        %v405 = vadd.f32 %v361, %v404
        %406 = vdwg.mxu0
        %407 = vmatpush.msra.mxu0 0.0
        %408 = vmatpush.msra.mxu0 0.0
        %409 = vmatpush.msra.mxu0 0.0
        %410 = vmatpush.msra.mxu0 0.0
        %411 = vmatpush.msra.mxu0 0.0
        %412 = vmatpush.msra.mxu0 0.0
        %413 = vmatpush.msra.mxu0 0.0
        %414 = vmatpush.msra.mxu0 0.0
        %415 = vmatpush.msra.mxu0 0.0
        %416 = vmatpush.msra.mxu0 0.0
        %417 = vmatpush.msra.mxu0 0.0
        %418 = vmatpush.msra.mxu0 0.0
        %419 = vmatpush.msra.mxu0 0.0
        %420 = vmatpush.msra.mxu0 %v354
        %421 = vmatpush.msra.mxu0 %v322
        %422 = vmatpush.msra.mxu0 %v339
        %423 = vmatmul.f32.gmra.mxu0 %v365
        %v424 = vpop.f32.mrf.mxu0
        %v425 = vadd.f32 %v361, %v424
        %426 = vdwg.mxu0
        %427 = vmatpush.msra.mxu0 0.0
        %428 = vmatpush.msra.mxu0 0.0
        %429 = vmatpush.msra.mxu0 0.0
        %430 = vmatpush.msra.mxu0 0.0
        %431 = vmatpush.msra.mxu0 0.0
        %432 = vmatpush.msra.mxu0 0.0
        %433 = vmatpush.msra.mxu0 0.0
        %434 = vmatpush.msra.mxu0 0.0
        %435 = vmatpush.msra.mxu0 0.0
        %436 = vmatpush.msra.mxu0 0.0
        %437 = vmatpush.msra.mxu0 0.0
        %438 = vmatpush.msra.mxu0 0.0
        %439 = vmatpush.msra.mxu0 0.0
        %440 = vmatpush.msra.mxu0 %v355
        %441 = vmatpush.msra.mxu0 %v323
        %442 = vmatpush.msra.mxu0 %v340
        %443 = vmatmul.f32.gmra.mxu0 %v365
        %v444 = vpop.f32.mrf.mxu0
        %v445 = vadd.f32 %v361, %v444
        %446 = vdwg.mxu0
        %v447 = vld [vmem:[%s3] sm:$0xff]
        %v448 = vld [vmem:[%s4] sm:$0xff]
        %450 = vset.pattern.permute.xlu0 0
        %451 = vperm.xlu0 %450, %v448
        %v452 = vpop.permute.xlu0 %451
        %vm454 = vcmask 64512
        %v456 = vsel %vm454, %v447, 0
        %458 = vmatpush.msra.mxu0 0.0
        %459 = vmatpush.msra.mxu0 0.0
        %460 = vmatpush.msra.mxu0 0.0
        %461 = vmatpush.msra.mxu0 0.0
        %462 = vmatpush.msra.mxu0 0.0
        %463 = vmatpush.msra.mxu0 0.0
        %464 = vmatpush.msra.mxu0 0.0
        %465 = vmatpush.msra.mxu0 0.0
        %466 = vmatpush.msra.mxu0 0.0
        %467 = vmatpush.msra.mxu0 0.0
        %468 = vmatpush.msra.mxu0 0.0
        %469 = vmatpush.msra.mxu0 0.0
        %470 = vmatpush.msra.mxu0 0.0
        %471 = vmatpush.msra.mxu0 0.0
        %472 = vmatpush.msra.mxu0 0.0
        %473 = vmatpush.msra.mxu0 %v320
        %474 = vmatmul.f32.gmra.mxu0 %v456
        %v475 = vpop.f32.mrf.mxu0
        %v476 = vadd.f32 %v452, %v475
        %477 = vdwg.mxu0
        %478 = vmatpush.msra.mxu0 0.0
        %479 = vmatpush.msra.mxu0 0.0
        %480 = vmatpush.msra.mxu0 0.0
        %481 = vmatpush.msra.mxu0 0.0
        %482 = vmatpush.msra.mxu0 0.0
        %483 = vmatpush.msra.mxu0 0.0
        %484 = vmatpush.msra.mxu0 0.0
        %485 = vmatpush.msra.mxu0 0.0
        %486 = vmatpush.msra.mxu0 0.0
        %487 = vmatpush.msra.mxu0 0.0
        %488 = vmatpush.msra.mxu0 0.0
        %489 = vmatpush.msra.mxu0 0.0
        %490 = vmatpush.msra.mxu0 0.0
        %491 = vmatpush.msra.mxu0 0.0
        %492 = vmatpush.msra.mxu0 0.0
        %493 = vmatpush.msra.mxu0 %v321
        %494 = vmatmul.f32.gmra.mxu0 %v456
        %v495 = vpop.f32.mrf.mxu0
        %v496 = vadd.f32 %v452, %v495
        %497 = vdwg.mxu0
        %498 = vmatpush.msra.mxu0 0.0
        %499 = vmatpush.msra.mxu0 0.0
        %500 = vmatpush.msra.mxu0 0.0
        %501 = vmatpush.msra.mxu0 0.0
        %502 = vmatpush.msra.mxu0 0.0
        %503 = vmatpush.msra.mxu0 0.0
        %504 = vmatpush.msra.mxu0 0.0
        %505 = vmatpush.msra.mxu0 0.0
        %506 = vmatpush.msra.mxu0 0.0
        %507 = vmatpush.msra.mxu0 0.0
        %508 = vmatpush.msra.mxu0 0.0
        %509 = vmatpush.msra.mxu0 0.0
        %510 = vmatpush.msra.mxu0 0.0
        %511 = vmatpush.msra.mxu0 0.0
        %512 = vmatpush.msra.mxu0 0.0
        %513 = vmatpush.msra.mxu0 %v322
        %514 = vmatmul.f32.gmra.mxu0 %v456
        %v515 = vpop.f32.mrf.mxu0
        %v516 = vadd.f32 %v452, %v515
        %517 = vdwg.mxu0
        %518 = vmatpush.msra.mxu0 0.0
        %519 = vmatpush.msra.mxu0 0.0
        %520 = vmatpush.msra.mxu0 0.0
        %521 = vmatpush.msra.mxu0 0.0
        %522 = vmatpush.msra.mxu0 0.0
        %523 = vmatpush.msra.mxu0 0.0
        %524 = vmatpush.msra.mxu0 0.0
        %525 = vmatpush.msra.mxu0 0.0
        %526 = vmatpush.msra.mxu0 0.0
        %527 = vmatpush.msra.mxu0 0.0
        %528 = vmatpush.msra.mxu0 0.0
        %529 = vmatpush.msra.mxu0 0.0
        %530 = vmatpush.msra.mxu0 0.0
        %531 = vmatpush.msra.mxu0 0.0
        %532 = vmatpush.msra.mxu0 0.0
        %533 = vmatpush.msra.mxu0 %v323
        %534 = vmatmul.f32.gmra.mxu0 %v456
        %v535 = vpop.f32.mrf.mxu0
        %v536 = vadd.f32 %v452, %v535
        %537 = vdwg.mxu0
        %v538 = vpack.c.bf16 %v385, %v385
        %v539 = vpack.c.bf16 %v405, %v405
        %v540 = vpack.c.bf16 %v425, %v425
        %v541 = vpack.c.bf16 %v445, %v445
        %542 = vst [vmem:[%s302] sm:$0xf] %v538
        %543 = vst [vmem:[%s302 + $0x4] sm:$0xf] %v539
        %544 = vst [vmem:[%s302 + $0x8] sm:$0xf] %v540
        %545 = vst [vmem:[%s302 + $0xc] sm:$0xf] %v541
        %v546 = vpack.c.bf16 %v476, %v476
        %v547 = vpack.c.bf16 %v496, %v496
        %v548 = vpack.c.bf16 %v516, %v516
        %v549 = vpack.c.bf16 %v536, %v536
        %550 = vst [vmem:[%s309] sm:$0xf] %v546
        %551 = vst [vmem:[%s309 + $0x4] sm:$0xf] %v547
        %552 = vst [vmem:[%s309 + $0x8] sm:$0xf] %v548
        %553 = vst [vmem:[%s309 + $0xc] sm:$0xf] %v549
        %v554 = vadd.f32 %v385, %v405
        %v555 = vadd.f32 %v554, %v425
        %v556 = vadd.f32 %v555, %v445
        %557 = vadd.xlane.f32.xlu0 %v556
        %v558 = vpop.xlane.xlu0 %557
        %v559 = vmul.f32 %v385, %v385
        %v560 = vmul.f32 %v405, %v405
        %v561 = vmul.f32 %v425, %v425
        %v562 = vmul.f32 %v445, %v445
        %v563 = vadd.f32 %v559, %v560
        %v564 = vadd.f32 %v563, %v561
        %v565 = vadd.f32 %v564, %v562
        %566 = vadd.xlane.f32.xlu0 %v565
        %v567 = vpop.xlane.xlu0 %566
        %v568 = vadd.f32 %v476, %v496
        %v569 = vadd.f32 %v568, %v516
        %v570 = vadd.f32 %v569, %v536
        %571 = vadd.xlane.f32.xlu0 %v570
        %v572 = vpop.xlane.xlu0 %571
        %v573 = vmul.f32 %v476, %v476
        %v574 = vmul.f32 %v496, %v496
        %v575 = vmul.f32 %v516, %v516
        %v576 = vmul.f32 %v536, %v536
        %v577 = vadd.f32 %v573, %v574
        %v578 = vadd.f32 %v577, %v575
        %v579 = vadd.f32 %v578, %v576
        %580 = vadd.xlane.f32.xlu0 %v579
        %v581 = vpop.xlane.xlu0 %580
        %vm582 = vcmask 7168
        %v583 = vsel %vm582, %v558, %v567
        %vm584 = vcmask 15360
        %v585 = vsel %vm584, %v583, %v572
        %vm586 = vcmask 23552
        %v587 = vsel %vm586, %v585, %v581
        %vm588 = vcmask 31744
        %v589 = vsel %vm588, %v587, 0.0
        %590 = vst.msk [vmem:[%s316] sm:$0xff] %vm454, %v589
        %s591 = sand.u32 %s146, 1
        %s592 = scalar_lea.sflag [#allocation4], %s591
        %s593 = sand.u32 %s146, 1
        %s594 = smul.addr %s593, 16
        %s595 = scalar_lea.vmem [#allocation5], %s594
        %s596 = sand.u32 %s28, 1
        %s597 = scalar_lea.sflag [#allocation7], %s596
        %s598 = sand.u32 %s172, 1
        %s599 = smul.addr %s598, 16
        %s600 = scalar_lea.vmem [#allocation6], %s599
        %s601 = sand.u32 %s28, 1
        %s602 = scalar_lea.sflag [#allocation7], %s601
        %s603 = sand.u32 %s198, 1
        %s604 = smul.addr %s603, 8
        %s605 = scalar_lea.vmem [#allocation8], %s604
        // Predicated region
        $region45: #{tpu_custom_call.1} parent=39 // pred_check
          %p606 = pneg %p156
        $region46: #{tpu_custom_call.1} parent=39 // pred_check_branch
          %608 = sbr.rel (%p606) target = $region48
        $region47: #{tpu_custom_call.1} parent=39 // pred_region
          %s609 = smul.u32 4, %s28
          %611 = vsyncadd %s592, 0
          %s612 = smul.addr %s609, 4
          %s613 = scalar_lea.hbm %s5, %s612
          %s614 = sshll.u32 %s595, 4
          %s615 = int_to_ptr.vmem [resolvable:$true] %s614
          %s616 = sshll.u32 %s613, 4
          %s617 = int_to_ptr.hbm [resolvable:$true] %s616
          %622 = dma.vmem_to_hbm [thread:$0]  %s615, 256, %s617, %s592, 64, 64, 4
        $region48: #{tpu_custom_call.1} parent=39 // pred_fallthru
          _
        // Predicated region
        $region49: #{tpu_custom_call.1} parent=39 // pred_check
          %p623 = pneg %p182
        $region50: #{tpu_custom_call.1} parent=39 // pred_check_branch
          %625 = sbr.rel (%p623) target = $region52
        $region51: #{tpu_custom_call.1} parent=39 // pred_region
          %s626 = smul.u32 4, %s28
          %628 = vsyncadd %s597, 0
          %s629 = smul.addr %s626, 4
          %s630 = scalar_lea.hbm %s6, %s629
          %s631 = sshll.u32 %s600, 4
          %s632 = int_to_ptr.vmem [resolvable:$true] %s631
          %s633 = sshll.u32 %s630, 4
          %s634 = int_to_ptr.hbm [resolvable:$true] %s633
          %639 = dma.vmem_to_hbm [thread:$0]  %s632, 256, %s634, %s597, 64, 64, 4
        $region52: #{tpu_custom_call.1} parent=39 // pred_fallthru
          _
        // Predicated region
        $region53: #{tpu_custom_call.1} parent=39 // pred_check
          %p640 = pneg %p208
        $region54: #{tpu_custom_call.1} parent=39 // pred_check_branch
          %642 = sbr.rel (%p640) target = $region56
        $region55: #{tpu_custom_call.1} parent=39 // pred_region
          %644 = vsyncadd %s602, 0
          %s645 = smul.addr %s28, 8
          %s646 = scalar_lea.hbm %s7, %s645
          %s648 = sshll.u32 %s605, 4
          %s649 = int_to_ptr.vmem [resolvable:$true] %s648
          %s650 = sshll.u32 %s646, 4
          %s651 = int_to_ptr.hbm [resolvable:$true] %s650
          %653 = dma.vmem_to_hbm [thread:$0]  %s649, 128, %s651, %s602
        $region56: #{tpu_custom_call.1} parent=39 // pred_fallthru
          _
      $region40: #{tpu_custom_call.1} parent=5 // pred_fallthru
        _
      %p654 = scmp.le.s32.totalorder 2, %s23
      // Predicated region
      $region57: #{tpu_custom_call.1} parent=5 // pred_check
        %p655 = pneg %p654
      $region58: #{tpu_custom_call.1} parent=5 // pred_check_branch
        %657 = sbr.rel (%p655) target = $region60
      $region59: #{tpu_custom_call.1} parent=5 // pred_region
        %s658 = ssub.s32 %s23, 2
        // Predicated region
        $region61: #{tpu_custom_call.1} parent=59 // pred_check
          %p659 = pneg %p162
        $region62: #{tpu_custom_call.1} parent=59 // pred_check_branch
          %661 = sbr.rel (%p659) target = $region64
        $region63: #{tpu_custom_call.1} parent=59 // pred_region
          %s662 = sand.u32 %s147, 1
          %s663 = scalar_lea.sflag [#allocation4], %s662
          %s664 = sand.u32 %s147, 1
          %s665 = smul.addr %s664, 16
          %s666 = scalar_lea.vmem [#allocation5], %s665
          %668 = dma.done %s663, 256
        $region64: #{tpu_custom_call.1} parent=59 // pred_fallthru
          _
        // Predicated region
        $region65: #{tpu_custom_call.1} parent=59 // pred_check
          %p669 = pneg %p188
        $region66: #{tpu_custom_call.1} parent=59 // pred_check_branch
          %671 = sbr.rel (%p669) target = $region68
        $region67: #{tpu_custom_call.1} parent=59 // pred_region
          %s672 = sand.u32 %s29, 1
          %s673 = scalar_lea.sflag [#allocation7], %s672
          %s674 = sand.u32 %s173, 1
          %s675 = smul.addr %s674, 16
          %s676 = scalar_lea.vmem [#allocation6], %s675
          %678 = dma.done %s673, 256
        $region68: #{tpu_custom_call.1} parent=59 // pred_fallthru
          _
        // Predicated region
        $region69: #{tpu_custom_call.1} parent=59 // pred_check
          %p679 = pneg %p214
        $region70: #{tpu_custom_call.1} parent=59 // pred_check_branch
          %681 = sbr.rel (%p679) target = $region72
        $region71: #{tpu_custom_call.1} parent=59 // pred_region
          %s682 = sand.u32 %s29, 1
          %s683 = scalar_lea.sflag [#allocation7], %s682
          %s684 = sand.u32 %s199, 1
          %s685 = smul.addr %s684, 8
          %s686 = scalar_lea.vmem [#allocation8], %s685
          %688 = dma.done %s683, 128
        $region72: #{tpu_custom_call.1} parent=59 // pred_fallthru
          _
      $region60: #{tpu_custom_call.1} parent=5 // pred_fallthru
        _
    $region6: #{tpu_custom_call.1} parent=1 // loop_footer
      %s27 = sadd.s32 1, %s23
    $region7: #{tpu_custom_call.1} parent=1 // loop_footer_branch
      %22 = sbr.rel target = $region3
    $region8: #{tpu_custom_call.1} parent=1 // loop_exit
      _
    %689 = vsyncpa [#allocation3], 1
    %s690 = scalar_lea.sflag [#allocation3], 1
    %691 = vsyncpa %s690, 1
    %692 = vsyncpa [#allocation4], 1
    %s693 = scalar_lea.sflag [#allocation4], 1
    %694 = vsyncpa %s693, 1
    %695 = vsyncpa [#allocation7], 1
    %s696 = scalar_lea.sflag [#allocation7], 1
    %697 = vsyncpa %s696, 1

</llo_original>
